<compile_context>
chip_gen: v5e
topology: v5e:2x2
jax: 0.10.0
libtpu: 0.0.40
codegen_flags: <defaults>
</compile_context>

<pallas_src>
import functools

import jax
import jax.numpy as jnp
from jax import lax
from jax.experimental import pallas as pl
from jax.experimental.pallas import tpu as pltpu


def _fivestar_kernel(head_ref, rel_ref, out_ref, *reg_refs, dim, compute_reg):
    """One batch tile of the 5*E scoring.

    head_ref: (TB, 2*D)  [head_re | head_im]
    rel_ref : (TB, 8*D)  [re_a | im_a | re_b | im_b | re_c | im_c | re_d | im_d]
    out_ref : (TB, 2*D)  [up_re | up_im]       (fused lane-dense output slab)
    reg_refs: ((1, 1, D),) per-block lane-partial of the regularization sum
              (only present when compute_reg=True)
    """
    D = dim

    head_re = head_ref[:, pl.ds(0, D)].astype(jnp.float32)
    head_im = head_ref[:, pl.ds(D, D)].astype(jnp.float32)

    def rel(k):
        return rel_ref[:, pl.ds(k * D, D)].astype(jnp.float32)

    def add_sq(acc, re, im):
        if not compute_reg:
            return None
        sq = re * re + im * im
        return sq if acc is None else acc + sq

    rel_sq = None

    # ---- numerator ("top"): head * rel_a + rel_b ----------------------------
    rel_re_a = rel(0)
    rel_im_a = rel(1)
    score_re_top = head_re * rel_re_a - head_im * rel_im_a
    score_im_top = head_re * rel_im_a + head_im * rel_re_a
    rel_sq = add_sq(rel_sq, rel_re_a, rel_im_a)

    rel_re_b = rel(2)
    rel_im_b = rel(3)
    score_re_top = score_re_top + rel_re_b
    score_im_top = score_im_top + rel_im_b
    rel_sq = add_sq(rel_sq, rel_re_b, rel_im_b)

    # ---- denominator ("dn"): head * rel_c + rel_d ----------------------------
    rel_re_c = rel(4)
    rel_im_c = rel(5)
    score_re_dn = head_re * rel_re_c - head_im * rel_im_c
    score_im_dn = head_re * rel_im_c + head_im * rel_re_c
    rel_sq = add_sq(rel_sq, rel_re_c, rel_im_c)

    rel_re_d = rel(6)
    rel_im_d = rel(7)
    score_re_dn = score_re_dn + rel_re_d
    score_im_dn = score_im_dn + rel_im_d
    rel_sq = add_sq(rel_sq, rel_re_d, rel_im_d)

    # ---- complex division top / dn -------------------------------------------
    # PyTorch divides by sqrt(|dn|^2); fuse sqrt + divide into one rsqrt (EUP).
    inv_dn = lax.rsqrt(score_re_dn * score_re_dn + score_im_dn * score_im_dn)
    up_re = (score_re_top * score_re_dn + score_im_top * score_im_dn) * inv_dn
    up_im = (score_re_top * score_im_dn - score_im_top * score_re_dn) * inv_dn

    out_ref[:, pl.ds(0, D)] = up_re.astype(out_ref.dtype)
    out_ref[:, pl.ds(D, D)] = up_im.astype(out_ref.dtype)

    # ---- regularization partial ----------------------------------------------
    # sum( 2*(|head|^2)^1.5 + (sum of squared rel parts)^1.5 ); x**1.5 == x*sqrt(x)
    if compute_reg:
        (reg_ref,) = reg_refs
        head_sq = head_re * head_re + head_im * head_im
        reg_vals = 2.0 * head_sq * jnp.sqrt(head_sq) + rel_sq * jnp.sqrt(rel_sq)
        # Reduce only over the batch (sublane) axis; cross-lane and cross-block
        # reductions happen in the wrapper (lets the grid axis stay parallel).
        reg_ref[...] = jnp.sum(reg_vals, axis=0, keepdims=True)[None, :, :]


def _vmem_capacity_bytes():
    """Physical VMEM bytes for this generation (conservative fallback)."""
    try:
        info = pltpu.get_tpu_info()
        cap = getattr(info, "vmem_capacity_bytes", None)
        if cap:
            return int(cap)
    except Exception:
        pass
    return 64 * 1024 * 1024  # v7x per-TC physical; safe lower bound everywhere


def _pick_batch_tile(batch, dim, *, in_itemsize, out_itemsize, sublane):
    """Pick a batch tile: largest divisor that fits VMEM AND keeps >= 2 blocks.

    Preferring an even block count >= 2 gives BlockSpec pipelining (hide
    compute + writeback under the input DMA) and lets v7x shard the batch
    axis across both TensorCores.  Single-block only when the batch is too
    small or doesn't tile cleanly.
    """
    # Double-buffered per-step footprint: (10*D in + 2*D out) per row, x2 bufs.
    bytes_per_row = 2 * (10 * dim * in_itemsize + 2 * dim * out_itemsize)
    budget = min(16 * 1024 * 1024,
                 max(4 * 1024 * 1024, _vmem_capacity_bytes() // 4))
    max_tile = max(sublane, (budget // bytes_per_row) // sublane * sublane)

    if batch % sublane != 0 or batch <= sublane:
        # Block shape == full array dims is always legal; run as one block.
        return batch

    candidates = [t for t in range(sublane, min(batch, max_tile) + 1, sublane)
                  if batch % t == 0]
    if not candidates:
        return batch

    multi = [t for t in candidates if batch // t >= 2]
    if multi:
        even = [t for t in multi if (batch // t) % 2 == 0]
        return max(even) if even else max(multi)
    return max(candidates)


def fivestar_forward(head_emb, rel_emb, *, dimension, regularization=0.1,
                     batch_tile=None, compute_reg=True,
                     out_dtype=jnp.float32):
    """Pallas implementation of FiveStarE.forward (post-encoder part).

    head_emb: (B, 2*dimension) float32 or bfloat16 (upcast inside the kernel)
    rel_emb : (B, 8*dimension) float32 or bfloat16
    Returns (up_re, up_im, reg_weight) matching the PyTorch semantics.
    """
    B = head_emb.shape[0]
    D = dimension
    assert head_emb.shape == (B, 2 * D)
    assert rel_emb.shape == (B, 8 * D)
    assert D % 128 == 0, "pad the embedding dim to a multiple of 128 lanes"

    in_itemsize = jnp.dtype(head_emb.dtype).itemsize
    out_itemsize = jnp.dtype(out_dtype).itemsize
    # bf16 inputs pack two rows per sublane -> 16-row alignment avoids relayout.
    sublane = 16 if in_itemsize == 2 else 8

    if batch_tile is None:
        batch_tile = _pick_batch_tile(
            B, D, in_itemsize=in_itemsize, out_itemsize=out_itemsize,
            sublane=sublane)
    assert B % batch_tile == 0
    num_blocks = B // batch_tile

    out_shapes = [jax.ShapeDtypeStruct((B, 2 * D), out_dtype)]
    out_specs = [pl.BlockSpec((batch_tile, 2 * D), lambda i: (i, 0))]
    if compute_reg:
        # (num_blocks, 1, D): trailing two block dims equal the array dims,
        # so the block-shape constraint is satisfied for any num_blocks.
        out_shapes.append(jax.ShapeDtypeStruct((num_blocks, 1, D), jnp.float32))
        out_specs.append(pl.BlockSpec((1, 1, D), lambda i: (i, 0, 0)))

    in_bytes = (head_emb.size * in_itemsize
                + rel_emb.size * jnp.dtype(rel_emb.dtype).itemsize)
    out_bytes = B * 2 * D * out_itemsize + (num_blocks * D * 4 if compute_reg else 0)
    cost = pl.CostEstimate(
        flops=(50 if compute_reg else 30) * B * D,
        transcendentals=(3 if compute_reg else 1) * B * D,
        bytes_accessed=in_bytes + out_bytes,
    )

    vmem_limit = min(32 * 1024 * 1024,
                     max(16 * 1024 * 1024, _vmem_capacity_bytes() // 2))

    results = pl.pallas_call(
        functools.partial(_fivestar_kernel, dim=D, compute_reg=compute_reg),
        out_shape=tuple(out_shapes),
        grid_spec=pltpu.PrefetchScalarGridSpec(
            num_scalar_prefetch=0,
            grid=(num_blocks,),
            in_specs=[
                pl.BlockSpec((batch_tile, 2 * D), lambda i: (i, 0)),
                pl.BlockSpec((batch_tile, 8 * D), lambda i: (i, 0)),
            ],
            out_specs=tuple(out_specs),
        ),
        compiler_params=pltpu.CompilerParams(
            # Per-block independent outputs -> the batch axis is parallel
            # (megacore-shardable on v7x; a measured no-op on v5e/v6e).
            # TODO(synk): switch to pltpu.CORE_PARALLEL on v7x toolchains where
            #             plain "parallel" does not shard across the two TCs.
            dimension_semantics=("parallel",),
            vmem_limit_bytes=vmem_limit,
        ),
        cost_estimate=cost,
    )(head_emb, rel_emb)

    if compute_reg:
        out, reg_partials = results
        reg_weight = regularization * jnp.sum(reg_partials) / B
    else:
        out = results[0] if isinstance(results, (tuple, list)) else results
        reg_weight = jnp.zeros((), jnp.float32)

    up_re = out[:, :D]
    up_im = out[:, D:]
    return up_re, up_im, reg_weight


def _reference(head_emb, rel_emb, dimension, regularization):
    D = dimension
    head_re, head_im = head_emb[:, :D], head_emb[:, D:]
    parts = [rel_emb[:, i * D:(i + 1) * D] for i in range(8)]
    (rel_re_a, rel_im_a, rel_re_b, rel_im_b,
     rel_re_c, rel_im_c, rel_re_d, rel_im_d) = parts
    score_re_a = head_re * rel_re_a - head_im * rel_im_a
    score_im_a = head_re * rel_im_a + head_im * rel_re_a
    score_re_top = score_re_a + rel_re_b
    score_im_top = score_im_a + rel_im_b
    score_re_c = head_re * rel_re_c - head_im * rel_im_c
    score_im_c = head_re * rel_im_c + head_im * rel_re_c
    score_re_dn = score_re_c + rel_re_d
    score_im_dn = score_im_c + rel_im_d
    dn_re = jnp.sqrt(score_re_dn ** 2 + score_im_dn ** 2)
    up_re = (score_re_top * score_re_dn + score_im_top * score_im_dn) / dn_re
    up_im = (score_re_top * score_im_dn - score_im_top * score_re_dn) / dn_re
    reg = regularization * jnp.sum(
        2.0 * (head_re ** 2 + head_im ** 2) ** 1.5
        + (rel_re_a ** 2 + rel_im_a ** 2 + rel_re_b ** 2 + rel_im_b ** 2
           + rel_re_c ** 2 + rel_im_c ** 2 + rel_re_d ** 2 + rel_im_d ** 2) ** 1.5
    ) / head_emb.shape[0]
    return up_re, up_im, reg


if __name__ == "__main__":
    B = 16          # number of (entity, relation) text pairs in the batch
    D = 128         # embedding dimension (module default 200; 128 = lane-aligned)
    REG = 0.1

    key = jax.random.PRNGKey(0)
    k1, k2 = jax.random.split(key)
    # Deterministic synthetic encoder outputs (stand-ins for ent/rel encoders).
    head_emb = jax.random.normal(k1, (B, 2 * D), dtype=jnp.float32)
    rel_emb = jax.random.normal(k2, (B, 8 * D), dtype=jnp.float32)

    up_re, up_im, reg_weight = fivestar_forward(
        head_emb, rel_emb, dimension=D, regularization=REG)
    jax.block_until_ready((up_re, up_im, reg_weight))

    ref_re, ref_im, ref_reg = _reference(head_emb, rel_emb, D, REG)
    assert jnp.allclose(up_re, ref_re, atol=1e-4, rtol=1e-4)
    assert jnp.allclose(up_im, ref_im, atol=1e-4, rtol=1e-4)
    assert jnp.allclose(reg_weight, ref_reg, atol=1e-3, rtol=1e-4)

    # Also exercise the inference-only path (no regularization output).
    s_re, s_im, _ = fivestar_forward(
        head_emb, rel_emb, dimension=D, regularization=REG, compute_reg=False)
    jax.block_until_ready((s_re, s_im))
    assert jnp.allclose(s_re, ref_re, atol=1e-4, rtol=1e-4)
    assert jnp.allclose(s_im, ref_im, atol=1e-4, rtol=1e-4)

    print("KERNEL_OK")
</pallas_src>

<mosaic_0001>
module attributes {stable_mosaic.version = 11 : i64} {
  func.func @_fivestar_kernel(%arg0: i32, %arg1: memref<8x256xf32, #tpu.memory_space<vmem>>, %arg2: memref<8x1024xf32, #tpu.memory_space<vmem>>, %arg3: memref<8x256xf32, #tpu.memory_space<vmem>>, %arg4: memref<1x1x128xf32, #tpu.memory_space<vmem>>) attributes {dimension_semantics = [#tpu.dimension_semantics<parallel>], iteration_bounds = array<i64: 2>, scalar_prefetch = 0 : i64, scratch_operands = 0 : i64, tpu.core_type = #tpu.core_type<tc>, window_params = [{transform_indices = @transform_0, window_bounds = array<i64: 8, 256>}, {transform_indices = @transform_1, window_bounds = array<i64: 8, 1024>}, {transform_indices = @transform_2, window_bounds = array<i64: 8, 256>}, {transform_indices = @transform_3, window_bounds = array<i64: 1, 1, 128>}]} {
    %c0 = arith.constant 0 : index
    %c0_0 = arith.constant 0 : index
    %0 = vector.load %arg1[%c0, %c0_0] : memref<8x256xf32, #tpu.memory_space<vmem>>, vector<8x128xf32>
    %c0_1 = arith.constant 0 : index
    %c128 = arith.constant 128 : index
    %1 = vector.load %arg1[%c0_1, %c128] : memref<8x256xf32, #tpu.memory_space<vmem>>, vector<8x128xf32>
    %c0_2 = arith.constant 0 : index
    %c0_3 = arith.constant 0 : index
    %2 = vector.load %arg2[%c0_2, %c0_3] : memref<8x1024xf32, #tpu.memory_space<vmem>>, vector<8x128xf32>
    %c0_4 = arith.constant 0 : index
    %c128_5 = arith.constant 128 : index
    %3 = vector.load %arg2[%c0_4, %c128_5] : memref<8x1024xf32, #tpu.memory_space<vmem>>, vector<8x128xf32>
    %4 = arith.mulf %0, %2 : vector<8x128xf32>
    %5 = arith.mulf %1, %3 : vector<8x128xf32>
    %6 = arith.subf %4, %5 : vector<8x128xf32>
    %7 = arith.mulf %0, %3 : vector<8x128xf32>
    %8 = arith.mulf %1, %2 : vector<8x128xf32>
    %9 = arith.addf %7, %8 : vector<8x128xf32>
    %10 = arith.mulf %2, %2 : vector<8x128xf32>
    %11 = arith.mulf %3, %3 : vector<8x128xf32>
    %12 = arith.addf %10, %11 : vector<8x128xf32>
    %c0_6 = arith.constant 0 : index
    %c256 = arith.constant 256 : index
    %13 = vector.load %arg2[%c0_6, %c256] : memref<8x1024xf32, #tpu.memory_space<vmem>>, vector<8x128xf32>
    %c0_7 = arith.constant 0 : index
    %c384 = arith.constant 384 : index
    %14 = vector.load %arg2[%c0_7, %c384] : memref<8x1024xf32, #tpu.memory_space<vmem>>, vector<8x128xf32>
    %15 = arith.addf %6, %13 : vector<8x128xf32>
    %16 = arith.addf %9, %14 : vector<8x128xf32>
    %17 = arith.mulf %13, %13 : vector<8x128xf32>
    %18 = arith.mulf %14, %14 : vector<8x128xf32>
    %19 = arith.addf %17, %18 : vector<8x128xf32>
    %20 = arith.addf %12, %19 : vector<8x128xf32>
    %c0_8 = arith.constant 0 : index
    %c512 = arith.constant 512 : index
    %21 = vector.load %arg2[%c0_8, %c512] : memref<8x1024xf32, #tpu.memory_space<vmem>>, vector<8x128xf32>
    %c0_9 = arith.constant 0 : index
    %c640 = arith.constant 640 : index
    %22 = vector.load %arg2[%c0_9, %c640] : memref<8x1024xf32, #tpu.memory_space<vmem>>, vector<8x128xf32>
    %23 = arith.mulf %0, %21 : vector<8x128xf32>
    %24 = arith.mulf %1, %22 : vector<8x128xf32>
    %25 = arith.subf %23, %24 : vector<8x128xf32>
    %26 = arith.mulf %0, %22 : vector<8x128xf32>
    %27 = arith.mulf %1, %21 : vector<8x128xf32>
    %28 = arith.addf %26, %27 : vector<8x128xf32>
    %29 = arith.mulf %21, %21 : vector<8x128xf32>
    %30 = arith.mulf %22, %22 : vector<8x128xf32>
    %31 = arith.addf %29, %30 : vector<8x128xf32>
    %32 = arith.addf %20, %31 : vector<8x128xf32>
    %c0_10 = arith.constant 0 : index
    %c768 = arith.constant 768 : index
    %33 = vector.load %arg2[%c0_10, %c768] : memref<8x1024xf32, #tpu.memory_space<vmem>>, vector<8x128xf32>
    %c0_11 = arith.constant 0 : index
    %c896 = arith.constant 896 : index
    %34 = vector.load %arg2[%c0_11, %c896] : memref<8x1024xf32, #tpu.memory_space<vmem>>, vector<8x128xf32>
    %35 = arith.addf %25, %33 : vector<8x128xf32>
    %36 = arith.addf %28, %34 : vector<8x128xf32>
    %37 = arith.mulf %33, %33 : vector<8x128xf32>
    %38 = arith.mulf %34, %34 : vector<8x128xf32>
    %39 = arith.addf %37, %38 : vector<8x128xf32>
    %40 = arith.addf %32, %39 : vector<8x128xf32>
    %41 = arith.mulf %35, %35 : vector<8x128xf32>
    %42 = arith.mulf %36, %36 : vector<8x128xf32>
    %43 = arith.addf %41, %42 : vector<8x128xf32>
    %44 = math.rsqrt %43 : vector<8x128xf32>
    %45 = arith.mulf %15, %35 : vector<8x128xf32>
    %46 = arith.mulf %16, %36 : vector<8x128xf32>
    %47 = arith.addf %45, %46 : vector<8x128xf32>
    %48 = arith.mulf %47, %44 : vector<8x128xf32>
    %49 = arith.mulf %15, %36 : vector<8x128xf32>
    %50 = arith.mulf %16, %35 : vector<8x128xf32>
    %51 = arith.subf %49, %50 : vector<8x128xf32>
    %52 = arith.mulf %51, %44 : vector<8x128xf32>
    %c0_12 = arith.constant 0 : index
    %c0_13 = arith.constant 0 : index
    %53 = vector.load %arg3[%c0_12, %c0_13] : memref<8x256xf32, #tpu.memory_space<vmem>>, vector<8x128xf32>
    tpu.vector_store %arg3[%c0_12, %c0_13], %48 {strides = array<i32>} : memref<8x256xf32, #tpu.memory_space<vmem>>, vector<8x128xf32>,
    %c0_14 = arith.constant 0 : index
    %c128_15 = arith.constant 128 : index
    %54 = vector.load %arg3[%c0_14, %c128_15] : memref<8x256xf32, #tpu.memory_space<vmem>>, vector<8x128xf32>
    tpu.vector_store %arg3[%c0_14, %c128_15], %52 {strides = array<i32>} : memref<8x256xf32, #tpu.memory_space<vmem>>, vector<8x128xf32>,
    %55 = arith.mulf %0, %0 : vector<8x128xf32>
    %56 = arith.mulf %1, %1 : vector<8x128xf32>
    %57 = arith.addf %55, %56 : vector<8x128xf32>
    %cst = arith.constant 2.000000e+00 : f32
    %58 = vector.broadcast %cst : f32 to vector<8x128xf32>
    %59 = arith.mulf %58, %57 : vector<8x128xf32>
    %60 = math.sqrt %57 : vector<8x128xf32>
    %61 = arith.mulf %59, %60 : vector<8x128xf32>
    %62 = math.sqrt %40 : vector<8x128xf32>
    %63 = arith.mulf %40, %62 : vector<8x128xf32>
    %64 = arith.addf %61, %63 : vector<8x128xf32>
    %cst_16 = arith.constant dense<0.000000e+00> : vector<128xf32>
    %65 = vector.multi_reduction <add>, %64, %cst_16 [0] : vector<8x128xf32> to vector<128xf32>
    %66 = vector.shape_cast %65 : vector<128xf32> to vector<1x128xf32>
    %67 = vector.shape_cast %66 : vector<1x128xf32> to vector<1x1x128xf32>
    %c0_17 = arith.constant 0 : index
    %c0_18 = arith.constant 0 : index
    %c0_19 = arith.constant 0 : index
    %68 = vector.load %arg4[%c0_17, %c0_18, %c0_19] : memref<1x1x128xf32, #tpu.memory_space<vmem>>, vector<1x1x128xf32>
    tpu.vector_store %arg4[%c0_17, %c0_18, %c0_19], %67 {strides = array<i32>} : memref<1x1x128xf32, #tpu.memory_space<vmem>>, vector<1x1x128xf32>,
    return
  }
  func.func @transform_0(%arg0: i32) -> (i32, i32) {
    %c0_i32 = arith.constant 0 : i32
    %c0_i32_0 = arith.constant 0 : i32
    return %arg0, %c0_i32 : i32, i32
  }
  func.func @transform_1(%arg0: i32) -> (i32, i32) {
    %c0_i32 = arith.constant 0 : i32
    %c0_i32_0 = arith.constant 0 : i32
    return %arg0, %c0_i32 : i32, i32
  }
  func.func @transform_2(%arg0: i32) -> (i32, i32) {
    %c0_i32 = arith.constant 0 : i32
    %c0_i32_0 = arith.constant 0 : i32
    return %arg0, %c0_i32 : i32, i32
  }
  func.func @transform_3(%arg0: i32) -> (i32, i32, i32) {
    %c0_i32 = arith.constant 0 : i32
    %c0_i32_0 = arith.constant 0 : i32
    %c0_i32_1 = arith.constant 0 : i32
    return %arg0, %c0_i32, %c0_i32_0 : i32, i32, i32
  }
}

</mosaic_0001>

<llo_original>
// kernel: tpu_custom_call.1
$region0: #{tpu_custom_call.1}
  #allocation0 [shape = 'u32[]', space=smem, size = 0x4, offset = 0x4, fixed_abs, tag = 'smem constant byte address 0x4 - core index']
  #allocation1 [shape = 'u32[72,128]{1,0:T(1,128)}', space=vmem, size = 0x9000, scoped, tag = 'internal scratch']
  %s0 = inlined_call_operand.hbm [shape: f32[16,256], index: 0, kind: input, shape index: {}]
  %s1 = inlined_call_operand.hbm [shape: f32[16,1024], index: 1, kind: input, shape index: {}]
  %s2 = inlined_call_operand.hbm [shape: f32[16,256], index: 2, kind: output, shape index: {0}]
  %s3 = inlined_call_operand.hbm [shape: f32[2,1,128], index: 3, kind: output, shape index: {1}]
  %4 = xla_tuple %s2, %s3
  %s5 = sld [smem:[#allocation0]]
  $region57: #{tpu_custom_call.1} parent=0
    _
  %s7 = ssub.s32 1, %s5
  %s8 = scalar_select 0, %s7, %s5
  $region1: #{tpu_custom_call.1} parent=0
    #allocation2 [shape = 'u8[16384]{0}', space=vmem, size = 0x4000, scoped, tag = 'input window, operand 0']
    #allocation3 [shape = 's32[2]{0}', space=sflag, size = 0x8, scoped, tag = 'scoped memory for tpu_custom_call.1']
    #allocation4 [shape = 's32[2]{0}', space=sflag, size = 0x8, scoped, tag = 'scoped memory for tpu_custom_call.1']
    #allocation5 [shape = 'u8[65536]{0}', space=vmem, size = 0x10000, scoped, tag = 'input window, operand 1']
    #allocation6 [shape = 's32[2]{0}', space=sflag, size = 0x8, scoped, tag = 'scoped memory for tpu_custom_call.1']
    #allocation7 [shape = 'u8[16384]{0}', space=vmem, size = 0x4000, scoped, tag = 'output window, operand 0']
    #allocation8 [shape = 'u8[1024]{0}', space=vmem, size = 0x400, scoped, tag = 'output window, operand 1']
    #allocation9 [shape = 's32[2]{0}', space=sflag, size = 0x8, scoped, tag = 'scoped memory for tpu_custom_call.1']
    %9 = vsyncpa [#allocation3], 0
    %s10 = scalar_lea.sflag [#allocation3], 1
    %11 = vsyncpa %s10, 0
    %12 = vsyncpa [#allocation6], 0
    %s13 = scalar_lea.sflag [#allocation6], 1
    %14 = vsyncpa %s13, 0
    %15 = vsyncpa [#allocation4], 0
    %s16 = scalar_lea.sflag [#allocation4], 1
    %17 = vsyncpa %s16, 0
    %18 = vsyncpa [#allocation9], 0
    %s19 = scalar_lea.sflag [#allocation9], 1
    %20 = vsyncpa %s19, 0
    loop: start=0, step=1, limit=4
    $region2: #{tpu_custom_call.1} parent=1 // loop_pre_header
      _
    $region3: #{tpu_custom_call.1} parent=1 // loop_header
      %s22 = sphi 0, %s26
      %p23 = scmp.ge.s32.totalorder %s22, 4
      %s32 = sphi 0, %s34
      %s35 = sphi 0, %s32
      %s36 = sphi 0, %s35
      %s52 = sphi 0, %s36
      %s58 = sphi 0, %s60
      %s61 = sphi 0, %s58
      %s62 = sphi 0, %s61
      %s78 = sphi 0, %s62
      %s84 = sphi 0, %s86
      %s87 = sphi 0, %s84
      %s88 = sphi 0, %s87
      %s104 = sphi 0, %s88
      %s110 = sphi 0, %s112
      %s113 = sphi 0, %s110
      %s114 = sphi 0, %s113
      %s130 = sphi 0, %s114
    $region4: #{tpu_custom_call.1} parent=1 // loop_header_branch
      %25 = sbr.rel (%p23) target = $region8
    $region5: #{tpu_custom_call.1} parent=1 // loop_body
      %s27 = ssub.s32 %s22, 1
      %s28 = ssub.s32 %s22, 2
      %s29 = sadd.s32 %s22, 1
      %s30 = ssub.s32 %s22, %s29
      %p31 = scmp.eq.s32.totalorder %s30, 0
      %s33 = sadd.s32 %s32, 1
      %s34 = scalar_select %p31, %s32, %s33
      %p37 = pneg %p31
      %p38 = scmp.eq.s32.totalorder %s22, 1
      %p39 = por %p37, %p38
      %p40 = scmp.ne.s32.totalorder %s32, %s35
      %p41 = scmp.eq.s32.totalorder %s22, 0
      %p42 = por %p40, %p41
      %p43 = scmp.ne.s32.totalorder %s32, %s35
      %p44 = scmp.eq.s32.totalorder %s27, 1
      %p45 = por %p43, %p44
      %p46 = scmp.ne.s32.totalorder %s35, %s36
      %p47 = scmp.eq.s32.totalorder %s27, 0
      %p48 = por %p46, %p47
      %p49 = scmp.ne.s32.totalorder %s35, %s36
      %p50 = scmp.eq.s32.totalorder %s28, 1
      %p51 = por %p49, %p50
      %p53 = scmp.ne.s32.totalorder %s36, %s52
      %p54 = scmp.eq.s32.totalorder %s28, 0
      %p55 = por %p53, %p54
      %s56 = ssub.s32 %s22, %s29
      %p57 = scmp.eq.s32.totalorder %s56, 0
      %s59 = sadd.s32 %s58, 1
      %s60 = scalar_select %p57, %s58, %s59
      %p63 = pneg %p57
      %p64 = scmp.eq.s32.totalorder %s22, 1
      %p65 = por %p63, %p64
      %p66 = scmp.ne.s32.totalorder %s58, %s61
      %p67 = scmp.eq.s32.totalorder %s22, 0
      %p68 = por %p66, %p67
      %p69 = scmp.ne.s32.totalorder %s58, %s61
      %p70 = scmp.eq.s32.totalorder %s27, 1
      %p71 = por %p69, %p70
      %p72 = scmp.ne.s32.totalorder %s61, %s62
      %p73 = scmp.eq.s32.totalorder %s27, 0
      %p74 = por %p72, %p73
      %p75 = scmp.ne.s32.totalorder %s61, %s62
      %p76 = scmp.eq.s32.totalorder %s28, 1
      %p77 = por %p75, %p76
      %p79 = scmp.ne.s32.totalorder %s62, %s78
      %p80 = scmp.eq.s32.totalorder %s28, 0
      %p81 = por %p79, %p80
      %s82 = ssub.s32 %s22, %s29
      %p83 = scmp.eq.s32.totalorder %s82, 0
      %s85 = sadd.s32 %s84, 1
      %s86 = scalar_select %p83, %s84, %s85
      %p89 = pneg %p83
      %p90 = scmp.eq.s32.totalorder %s22, 1
      %p91 = por %p89, %p90
      %p92 = scmp.ne.s32.totalorder %s84, %s87
      %p93 = scmp.eq.s32.totalorder %s22, 0
      %p94 = por %p92, %p93
      %p95 = scmp.ne.s32.totalorder %s84, %s87
      %p96 = scmp.eq.s32.totalorder %s27, 1
      %p97 = por %p95, %p96
      %p98 = scmp.ne.s32.totalorder %s87, %s88
      %p99 = scmp.eq.s32.totalorder %s27, 0
      %p100 = por %p98, %p99
      %p101 = scmp.ne.s32.totalorder %s87, %s88
      %p102 = scmp.eq.s32.totalorder %s28, 1
      %p103 = por %p101, %p102
      %p105 = scmp.ne.s32.totalorder %s88, %s104
      %p106 = scmp.eq.s32.totalorder %s28, 0
      %p107 = por %p105, %p106
      %s108 = ssub.s32 %s22, %s29
      %p109 = scmp.eq.s32.totalorder %s108, 0
      %s111 = sadd.s32 %s110, 1
      %s112 = scalar_select %p109, %s110, %s111
      %p115 = pneg %p109
      %p116 = scmp.eq.s32.totalorder %s22, 1
      %p117 = por %p115, %p116
      %p118 = scmp.ne.s32.totalorder %s110, %s113
      %p119 = scmp.eq.s32.totalorder %s22, 0
      %p120 = por %p118, %p119
      %p121 = scmp.ne.s32.totalorder %s110, %s113
      %p122 = scmp.eq.s32.totalorder %s27, 1
      %p123 = por %p121, %p122
      %p124 = scmp.ne.s32.totalorder %s113, %s114
      %p125 = scmp.eq.s32.totalorder %s27, 0
      %p126 = por %p124, %p125
      %p127 = scmp.ne.s32.totalorder %s113, %s114
      %p128 = scmp.eq.s32.totalorder %s28, 1
      %p129 = por %p127, %p128
      %p131 = scmp.ne.s32.totalorder %s114, %s130
      %p132 = scmp.eq.s32.totalorder %s28, 0
      %p133 = por %p131, %p132
      %p134 = scmp.le.s32.totalorder 1, %s22
      %p135 = scmp.lt.s32.totalorder %s22, 3
      %p136 = pnand %p134, %p135
      %p137 = pneg %p136
      // Predicated region
      $region9: #{tpu_custom_call.1} parent=5 // pred_check
        _
      $region10: #{tpu_custom_call.1} parent=5 // pred_check_branch
        %139 = sbr.rel (%p136) target = $region12
      $region11: #{tpu_custom_call.1} parent=5 // pred_region
        %s140 = ssub.s32 %s22, 1
      $region12: #{tpu_custom_call.1} parent=5 // pred_fallthru
        _
      %p141 = scmp.lt.s32.totalorder %s22, 2
      // Predicated region
      $region13: #{tpu_custom_call.1} parent=5 // pred_check
        %p142 = pneg %p141
      $region14: #{tpu_custom_call.1} parent=5 // pred_check_branch
        %144 = sbr.rel (%p142) target = $region16
      $region15: #{tpu_custom_call.1} parent=5 // pred_region
        // Predicated region
        $region17: #{tpu_custom_call.1} parent=15 // pred_check
          %p145 = pneg %p42
        $region18: #{tpu_custom_call.1} parent=15 // pred_check_branch
          %147 = sbr.rel (%p145) target = $region20
        $region19: #{tpu_custom_call.1} parent=15 // pred_region
          %s148 = sand.u32 %s32, 1
          %s149 = scalar_lea.sflag [#allocation3], %s148
          %s150 = sand.u32 %s32, 1
          %s151 = smul.addr %s150, 16
          %s152 = scalar_lea.vmem [#allocation2], %s151
          %154 = vsyncadd %s149, 0
          %s155 = smul.addr %s22, 2
          %s156 = smul.addr %s155, 8
          %s157 = scalar_lea.hbm %s0, %s156
          %s159 = sshll.u32 %s157, 4
          %s160 = int_to_ptr.hbm [resolvable:$true] %s159
          %s161 = sshll.u32 %s152, 4
          %s162 = int_to_ptr.vmem [resolvable:$true] %s161
          %164 = dma.hbm_to_vmem [thread:$0]  %s160, 256, %s162, %s149
        $region20: #{tpu_custom_call.1} parent=15 // pred_fallthru
          _
        // Predicated region
        $region21: #{tpu_custom_call.1} parent=15 // pred_check
          %p165 = pneg %p68
        $region22: #{tpu_custom_call.1} parent=15 // pred_check_branch
          %167 = sbr.rel (%p165) target = $region24
        $region23: #{tpu_custom_call.1} parent=15 // pred_region
          %s168 = sand.u32 %s58, 1
          %s169 = scalar_lea.sflag [#allocation6], %s168
          %s170 = sand.u32 %s58, 1
          %s171 = smul.addr %s170, 64
          %s172 = scalar_lea.vmem [#allocation5], %s171
          %174 = vsyncadd %s169, 0
          %s175 = smul.addr %s22, 8
          %s176 = smul.addr %s175, 8
          %s177 = scalar_lea.hbm %s1, %s176
          %s179 = sshll.u32 %s177, 4
          %s180 = int_to_ptr.hbm [resolvable:$true] %s179
          %s181 = sshll.u32 %s172, 4
          %s182 = int_to_ptr.vmem [resolvable:$true] %s181
          %184 = dma.hbm_to_vmem [thread:$0]  %s180, 1024, %s182, %s169
        $region24: #{tpu_custom_call.1} parent=15 // pred_fallthru
          _
      $region16: #{tpu_custom_call.1} parent=5 // pred_fallthru
        _
      %p185 = scmp.le.s32.totalorder 1, %s22
      %p186 = scmp.lt.s32.totalorder %s22, 3
      %p187 = pnand %p185, %p186
      %p188 = pneg %p187
      // Predicated region
      $region25: #{tpu_custom_call.1} parent=5 // pred_check
        _
      $region26: #{tpu_custom_call.1} parent=5 // pred_check_branch
        %190 = sbr.rel (%p187) target = $region28
      $region27: #{tpu_custom_call.1} parent=5 // pred_region
        %s191 = ssub.s32 %s22, 1
        %s192 = sand.u32 %s35, 1
        %s193 = scalar_lea.sflag [#allocation3], %s192
        %s194 = sand.u32 %s35, 1
        %s195 = smul.addr %s194, 16
        %s196 = scalar_lea.vmem [#allocation2], %s195
        // Predicated region
        $region29: #{tpu_custom_call.1} parent=27 // pred_check
          %p197 = pneg %p48
        $region30: #{tpu_custom_call.1} parent=27 // pred_check_branch
          %199 = sbr.rel (%p197) target = $region32
        $region31: #{tpu_custom_call.1} parent=27 // pred_region
          %201 = dma.done %s193, 256
        $region32: #{tpu_custom_call.1} parent=27 // pred_fallthru
          _
        %s202 = sand.u32 %s61, 1
        %s203 = scalar_lea.sflag [#allocation6], %s202
        %s204 = sand.u32 %s61, 1
        %s205 = smul.addr %s204, 64
        %s206 = scalar_lea.vmem [#allocation5], %s205
        // Predicated region
        $region33: #{tpu_custom_call.1} parent=27 // pred_check
          %p207 = pneg %p74
        $region34: #{tpu_custom_call.1} parent=27 // pred_check_branch
          %209 = sbr.rel (%p207) target = $region36
        $region35: #{tpu_custom_call.1} parent=27 // pred_region
          %211 = dma.done %s203, 1024
        $region36: #{tpu_custom_call.1} parent=27 // pred_fallthru
          _
        %s212 = sand.u32 %s35, 1
        %s213 = scalar_lea.sflag [#allocation3], %s212
        %s214 = sand.u32 %s35, 1
        %s215 = smul.addr %s214, 16
        %s216 = scalar_lea.vmem [#allocation2], %s215
        %p217 = pneg %p48
        %p218 = pneg %p45
        %s219 = sand.u32 %s61, 1
        %s220 = scalar_lea.sflag [#allocation6], %s219
        %s221 = sand.u32 %s61, 1
        %s222 = smul.addr %s221, 64
        %s223 = scalar_lea.vmem [#allocation5], %s222
        %p224 = pneg %p74
        %p225 = pneg %p71
        %p226 = pneg %p100
        %p227 = pneg %p97
        %s228 = sand.u32 %s87, 1
        %s229 = scalar_lea.sflag [#allocation4], %s228
        %s230 = sand.u32 %s87, 1
        %s231 = smul.addr %s230, 16
        %s232 = scalar_lea.vmem [#allocation7], %s231
        %p233 = pneg %p126
        %p234 = pneg %p123
        %s235 = sand.u32 %s113, 1
        %s236 = scalar_lea.sflag [#allocation9], %s235
        %s237 = sand.u32 %s113, 1
        %s238 = scalar_lea.vmem [#allocation8], %s237
        %v239 = vld [vmem:[%s196] sm:$0xff]
        %v240 = vld [vmem:[%s196 + $0x8] sm:$0xff]
        %v241 = vld [vmem:[%s206] sm:$0xff]
        %v242 = vld [vmem:[%s206 + $0x8] sm:$0xff]
        %v243 = vmul.f32 %v239, %v241
        %v244 = vmul.f32 %v240, %v242
        %v245 = vsub.f32 %v243, %v244
        %v246 = vmul.f32 %v239, %v242
        %v247 = vmul.f32 %v240, %v241
        %v248 = vadd.f32 %v246, %v247
        %v249 = vmul.f32 %v241, %v241
        %v250 = vmul.f32 %v242, %v242
        %v251 = vadd.f32 %v249, %v250
        %v252 = vld [vmem:[%s206 + $0x10] sm:$0xff]
        %v253 = vld [vmem:[%s206 + $0x18] sm:$0xff]
        %v254 = vadd.f32 %v245, %v252
        %v255 = vadd.f32 %v248, %v253
        %v256 = vmul.f32 %v252, %v252
        %v257 = vmul.f32 %v253, %v253
        %v258 = vadd.f32 %v256, %v257
        %v259 = vadd.f32 %v251, %v258
        %v260 = vld [vmem:[%s206 + $0x20] sm:$0xff]
        %v261 = vld [vmem:[%s206 + $0x28] sm:$0xff]
        %v262 = vmul.f32 %v239, %v260
        %v263 = vmul.f32 %v240, %v261
        %v264 = vsub.f32 %v262, %v263
        %v265 = vmul.f32 %v239, %v261
        %v266 = vmul.f32 %v240, %v260
        %v267 = vadd.f32 %v265, %v266
        %v268 = vmul.f32 %v260, %v260
        %v269 = vmul.f32 %v261, %v261
        %v270 = vadd.f32 %v268, %v269
        %v271 = vadd.f32 %v259, %v270
        %v272 = vld [vmem:[%s206 + $0x30] sm:$0xff]
        %v273 = vld [vmem:[%s206 + $0x38] sm:$0xff]
        %v274 = vadd.f32 %v264, %v272
        %v275 = vadd.f32 %v267, %v273
        %v276 = vmul.f32 %v272, %v272
        %v277 = vmul.f32 %v273, %v273
        %v278 = vadd.f32 %v276, %v277
        %v279 = vadd.f32 %v271, %v278
        %v280 = vmul.f32 %v274, %v274
        %v281 = vmul.f32 %v275, %v275
        %v282 = vadd.f32 %v280, %v281
        %v283 = vrsqrt.pop %v282
        %v284 = vmul.f32 %v283, %v282
        %v285 = vmul.f32 %v284, %v283
        %v286 = vmul.f32 0.5, %v285
        %v287 = vsub.f32 1.5, %v286
        %v288 = vmul.f32 %v283, %v287
        %vm289 = vweird.f32 %v282
        %vm290 = vweird.f32 %v283
        %vm291 = vmor %vm289, %vm290
        %v292 = vsel %vm291, %v283, %v288
        %v293 = vmul.f32 %v254, %v274
        %v294 = vmul.f32 %v255, %v275
        %v295 = vadd.f32 %v293, %v294
        %v296 = vmul.f32 %v295, %v292
        %v297 = vmul.f32 %v254, %v275
        %v298 = vmul.f32 %v255, %v274
        %v299 = vsub.f32 %v297, %v298
        %v300 = vmul.f32 %v299, %v292
        %301 = vst [vmem:[%s232] sm:$0xff] %v296
        %302 = vst [vmem:[%s232 + $0x8] sm:$0xff] %v300
        %v303 = vmul.f32 %v239, %v239
        %v304 = vmul.f32 %v240, %v240
        %v305 = vadd.f32 %v303, %v304
        %v306 = vmul.f32 %v305, 2.0
        %v307 = vrsqrt.pop %v305
        %v308 = vmul.f32 %v307, %v305
        %v309 = vmul.f32 %v308, %v307
        %v310 = vmul.f32 0.5, %v309
        %v311 = vsub.f32 1.5, %v310
        %v312 = vmul.f32 %v307, %v311
        %v313 = vmul.f32 %v305, %v312
        %vm314 = vcmp.eq.f32.partialorder %v305, inf
        %v315 = vsel %vm314, %v305, %v313
        %vm316 = vcmp.eq.f32.partialorder %v305, 0.0
        %v317 = vand.u32 %v305, 2147483648
        %v318 = vsel %vm316, %v317, %v315
        %v319 = vmul.f32 %v306, %v318
        %v320 = vrsqrt.pop %v279
        %v321 = vmul.f32 %v320, %v279
        %v322 = vmul.f32 %v321, %v320
        %v323 = vmul.f32 0.5, %v322
        %v324 = vsub.f32 1.5, %v323
        %v325 = vmul.f32 %v320, %v324
        %v326 = vmul.f32 %v279, %v325
        %vm327 = vcmp.eq.f32.partialorder %v279, inf
        %v328 = vsel %vm327, %v279, %v326
        %vm329 = vcmp.eq.f32.partialorder %v279, 0.0
        %v330 = vand.u32 %v279, 2147483648
        %v331 = vsel %vm329, %v330, %v328
        %v332 = vmul.f32 %v279, %v331
        %v333 = vadd.f32 %v319, %v332
        %v334 = vrot.slane %v333, 4
        %v335 = vadd.f32 %v333, %v334
        %v336 = vrot.slane %v335, 2
        %v337 = vadd.f32 %v335, %v336
        %v338 = vrot.slane %v337, 1
        %v339 = vadd.f32 %v337, %v338
        %340 = vst [vmem:[%s238] sm:$0x1] %v339
        %s341 = sand.u32 %s87, 1
        %s342 = scalar_lea.sflag [#allocation4], %s341
        %s343 = sand.u32 %s87, 1
        %s344 = smul.addr %s343, 16
        %s345 = scalar_lea.vmem [#allocation7], %s344
        %s346 = sand.u32 %s113, 1
        %s347 = scalar_lea.sflag [#allocation9], %s346
        %s348 = sand.u32 %s113, 1
        %s349 = scalar_lea.vmem [#allocation8], %s348
        // Predicated region
        $region37: #{tpu_custom_call.1} parent=27 // pred_check
          %p350 = pneg %p97
        $region38: #{tpu_custom_call.1} parent=27 // pred_check_branch
          %352 = sbr.rel (%p350) target = $region40
        $region39: #{tpu_custom_call.1} parent=27 // pred_region
          %354 = vsyncadd %s342, 0
          %s355 = smul.addr %s27, 2
          %s356 = smul.addr %s355, 8
          %s357 = scalar_lea.hbm %s2, %s356
          %s359 = sshll.u32 %s345, 4
          %s360 = int_to_ptr.vmem [resolvable:$true] %s359
          %s361 = sshll.u32 %s357, 4
          %s362 = int_to_ptr.hbm [resolvable:$true] %s361
          %364 = dma.vmem_to_hbm [thread:$0]  %s360, 256, %s362, %s342
        $region40: #{tpu_custom_call.1} parent=27 // pred_fallthru
          _
        // Predicated region
        $region41: #{tpu_custom_call.1} parent=27 // pred_check
          %p365 = pneg %p123
        $region42: #{tpu_custom_call.1} parent=27 // pred_check_branch
          %367 = sbr.rel (%p365) target = $region44
        $region43: #{tpu_custom_call.1} parent=27 // pred_region
          %369 = vsyncadd %s347, 0
          %s370 = scalar_lea.hbm %s3, %s27
          %s372 = sshll.u32 %s349, 4
          %s373 = int_to_ptr.vmem [resolvable:$true] %s372
          %s374 = sshll.u32 %s370, 4
          %s375 = int_to_ptr.hbm [resolvable:$true] %s374
          %377 = dma.vmem_to_hbm [thread:$0]  %s373, 16, %s375, %s347
        $region44: #{tpu_custom_call.1} parent=27 // pred_fallthru
          _
      $region28: #{tpu_custom_call.1} parent=5 // pred_fallthru
        _
      %p378 = scmp.le.s32.totalorder 2, %s22
      // Predicated region
      $region45: #{tpu_custom_call.1} parent=5 // pred_check
        %p379 = pneg %p378
      $region46: #{tpu_custom_call.1} parent=5 // pred_check_branch
        %381 = sbr.rel (%p379) target = $region48
      $region47: #{tpu_custom_call.1} parent=5 // pred_region
        %s382 = ssub.s32 %s22, 2
        // Predicated region
        $region49: #{tpu_custom_call.1} parent=47 // pred_check
          %p383 = pneg %p103
        $region50: #{tpu_custom_call.1} parent=47 // pred_check_branch
          %385 = sbr.rel (%p383) target = $region52
        $region51: #{tpu_custom_call.1} parent=47 // pred_region
          %s386 = sand.u32 %s88, 1
          %s387 = scalar_lea.sflag [#allocation4], %s386
          %s388 = sand.u32 %s88, 1
          %s389 = smul.addr %s388, 16
          %s390 = scalar_lea.vmem [#allocation7], %s389
          %392 = dma.done %s387, 256
        $region52: #{tpu_custom_call.1} parent=47 // pred_fallthru
          _
        // Predicated region
        $region53: #{tpu_custom_call.1} parent=47 // pred_check
          %p393 = pneg %p129
        $region54: #{tpu_custom_call.1} parent=47 // pred_check_branch
          %395 = sbr.rel (%p393) target = $region56
        $region55: #{tpu_custom_call.1} parent=47 // pred_region
          %s396 = sand.u32 %s114, 1
          %s397 = scalar_lea.sflag [#allocation9], %s396
          %s398 = sand.u32 %s114, 1
          %s399 = scalar_lea.vmem [#allocation8], %s398
          %401 = dma.done %s397, 16
        $region56: #{tpu_custom_call.1} parent=47 // pred_fallthru
          _
      $region48: #{tpu_custom_call.1} parent=5 // pred_fallthru
        _
    $region6: #{tpu_custom_call.1} parent=1 // loop_footer
      %s26 = sadd.s32 1, %s22
    $region7: #{tpu_custom_call.1} parent=1 // loop_footer_branch
      %21 = sbr.rel target = $region3
    $region8: #{tpu_custom_call.1} parent=1 // loop_exit
      _
    %402 = vsyncpa [#allocation3], 1
    %s403 = scalar_lea.sflag [#allocation3], 1
    %404 = vsyncpa %s403, 1
    %405 = vsyncpa [#allocation6], 1
    %s406 = scalar_lea.sflag [#allocation6], 1
    %407 = vsyncpa %s406, 1
    %408 = vsyncpa [#allocation4], 1
    %s409 = scalar_lea.sflag [#allocation4], 1
    %410 = vsyncpa %s409, 1
    %411 = vsyncpa [#allocation9], 1
    %s412 = scalar_lea.sflag [#allocation9], 1
    %413 = vsyncpa %s412, 1

</llo_original>
